<compile_context>
chip_gen: v5e
topology: v5e:2x2
jax: 0.10.0
libtpu: 0.0.40
codegen_flags: <defaults>
</compile_context>

<pallas_src>
import jax
import jax.numpy as jnp
from jax import lax
from jax.experimental import pallas as pl
from jax.experimental.pallas import tpu as pltpu

K = 7          # conv kernel size
PAD = 3        # conv padding


def spatial_attn_kernel(band_ref, b_ref, x_ref, o_ref):
    # band_ref: (K, 2W, W) f32 VMEM  banded conv weights (W-padding folded in)
    # b_ref:    (1,)       f32 SMEM  conv bias
    # x_ref:    (NB, C, H, W)        input block (NB batch elements)
    # o_ref:    (NB*H, W)            output block, rows are batch-major/H-minor
    nb, _, h, w = x_ref.shape
    m = nb * h

    x = x_ref[...].astype(jnp.float32)             # (NB, C, H, W)

    # Channel-wise mean / max pooling (VPU elementwise across channel vregs).
    # For DeepLab-scale C this block would be split with a channel grid axis
    # (running sum / running max in scratch); not needed at these sizes.
    avg = jnp.mean(x, axis=1)                      # (NB, H, W)
    mx = jnp.max(x, axis=1)                        # (NB, H, W)

    # Both conv input channels concatenated along the lane dim -> one matmul
    # contraction of length 2W per kh.
    pooled = jnp.concatenate([avg, mx], axis=-1)   # (NB, H, 2W)
    pooled = pooled.reshape(m, 2 * w)              # (NB*H, 2W)

    # Row position within each batch element, for masking the H-direction
    # zero padding (replaces explicit padded temporaries).
    row = lax.broadcasted_iota(jnp.int32, (m, 1), 0) % h

    acc = jnp.full((m, w), b_ref[0], dtype=jnp.float32)
    for kh in range(K):
        dh = kh - PAD
        if dh == 0:
            shifted = pooled
        else:
            # shifted[r, :] == pooled[r + dh, :] (wrap-around rows are masked
            # out below, so cross-batch / cross-edge leakage is zeroed).
            shifted = pltpu.roll(pooled, shift=(-dh) % m, axis=0)
        valid = (row + dh >= 0) & (row + dh < h)
        shifted = jnp.where(valid, shifted, 0.0)
        # MXU: (NB*H, 2W) @ (2W, W) — the whole W-direction conv for this kh.
        acc = acc + jnp.dot(shifted, band_ref[kh],
                            preferred_element_type=jnp.float32)

    o_ref[...] = jax.nn.sigmoid(acc).astype(o_ref.dtype)


def _build_banded_weights(w, width):
    """(1,2,K,K) OIHW conv weights -> (K, 2*width, width) banded matrices.

    band[kh, c*width + wi, wo] = w[0, c, kh, wi - wo + PAD] when that tap is
    inside the 7-wide window, else 0 (which also implements the W-direction
    zero padding by truncation).
    """
    wi = jnp.arange(width)[:, None]
    wo = jnp.arange(width)[None, :]
    kw = wi - wo + PAD                       # (width, width)
    valid = (kw >= 0) & (kw < K)
    kw_c = jnp.clip(kw, 0, K - 1)
    bands = []
    for c in range(2):
        wc = w[0, c].astype(jnp.float32)     # (K, K)
        bands.append(jnp.where(valid[None, :, :], wc[:, kw_c], 0.0))  # (K,W,W)
    return jnp.concatenate(bands, axis=1)    # (K, 2W, W)


def _pick_block_n(n, c, h, w, dtype, budget_bytes=4 << 20):
    """Largest divisor of N whose input block stays within a modest VMEM budget."""
    per_elem = c * h * w * jnp.dtype(dtype).itemsize
    nb = 1
    for cand in range(1, n + 1):
        if n % cand == 0 and cand * per_elem <= budget_bytes:
            nb = cand
    return nb


def spatial_attention(x, w, b, *, block_n=None):
    """x: (N, C, H, W) f32; w: (1, 2, 7, 7) f32; b: (1,) f32 -> (N, 1, H, W)."""
    N, C, H, W = x.shape
    band = _build_banded_weights(w, W)                 # (K, 2W, W)
    if block_n is None:
        block_n = _pick_block_n(N, C, H, W, x.dtype)
    grid = (N // block_n,)

    out = pl.pallas_call(
        spatial_attn_kernel,
        out_shape=jax.ShapeDtypeStruct((N * H, W), x.dtype),
        grid=grid,
        in_specs=[
            pl.BlockSpec((K, 2 * W, W), lambda n: (0, 0, 0)),          # weights
            pl.BlockSpec(memory_space=pltpu.MemorySpace.SMEM),         # bias
            pl.BlockSpec((block_n, C, H, W), lambda n: (n, 0, 0, 0)),  # input
        ],
        out_specs=pl.BlockSpec((block_n * H, W), lambda n: (n, 0)),
        compiler_params=pltpu.CompilerParams(
            dimension_semantics=("parallel",)),
    )(band, b, x)
    return out.reshape(N, 1, H, W)


def reference(x, w, b):
    avg = jnp.mean(x, axis=1, keepdims=True)
    mx = jnp.max(x, axis=1, keepdims=True)
    pooled = jnp.concatenate([avg, mx], axis=1)
    y = lax.conv_general_dilated(
        pooled, w, window_strides=(1, 1), padding=((PAD, PAD), (PAD, PAD)),
        dimension_numbers=("NCHW", "OIHW", "NCHW"),
        precision=lax.Precision.HIGHEST)
    return jax.nn.sigmoid(y + b.reshape(1, 1, 1, 1))


if __name__ == "__main__":
    key = jax.random.PRNGKey(0)
    kx, kw_, kb = jax.random.split(key, 3)

    # Small shapes consistent with the module: batch=2, channels=4, spatial=16.
    N, C, H, W = 2, 4, 16, 16
    x = jax.random.normal(kx, (N, C, H, W), dtype=jnp.float32)

    # Deterministic parameter init (Conv2d(2, 1, 7, padding=3) shapes).
    fan_in = 2 * K * K
    bound = 1.0 / (fan_in ** 0.5)
    w = jax.random.uniform(kw_, (1, 2, K, K), jnp.float32, -bound, bound)
    b = jax.random.uniform(kb, (1,), jnp.float32, -bound, bound)

    out = spatial_attention(x, w, b)
    out = jax.block_until_ready(out)

    ref = reference(x, w, b)
    assert out.shape == (N, 1, H, W)
    err = jnp.max(jnp.abs(out - ref))
    # MXU f32 matmuls at default precision may run as bf16 passes; allow for
    # that (real indexing bugs would produce errors ~1e-1, far above this).
    assert jnp.allclose(out, ref, atol=2e-3, rtol=2e-3), f"max abs diff {err}"

    print("KERNEL_OK")
</pallas_src>

<mosaic_0001>
module attributes {stable_mosaic.version = 11 : i64} {
  func.func @spatial_attn_kernel(%arg0: i32, %arg1: memref<7x32x16xf32, #tpu.memory_space<vmem>>, %arg2: memref<1xf32, #tpu.memory_space<smem>>, %arg3: memref<2x4x16x16xf32, #tpu.memory_space<vmem>>, %arg4: memref<32x16xf32, #tpu.memory_space<vmem>>) attributes {dimension_semantics = [#tpu.dimension_semantics<parallel>], iteration_bounds = array<i64: 1>, scalar_prefetch = 0 : i64, scratch_operands = 0 : i64, tpu.core_type = #tpu.core_type<tc>, window_params = [{pipeline_mode = #tpu.pipeline_mode<synchronous>, transform_indices = @transform_0, window_bounds = array<i64: 7, 32, 16>}, {transform_indices = @transform_1, window_bounds = array<i64: 1>}, {transform_indices = @transform_2, window_bounds = array<i64: 2, 4, 16, 16>}, {transform_indices = @transform_3, window_bounds = array<i64: 32, 16>}]} {
    %c0 = arith.constant 0 : index
    %c0_0 = arith.constant 0 : index
    %c0_1 = arith.constant 0 : index
    %c0_2 = arith.constant 0 : index
    %0 = vector.load %arg3[%c0, %c0_0, %c0_1, %c0_2] : memref<2x4x16x16xf32, #tpu.memory_space<vmem>>, vector<2x4x16x16xf32>
    %cst = arith.constant dense<0.000000e+00> : vector<2x16x16xf32>
    %1 = vector.multi_reduction <add>, %0, %cst [1] : vector<2x4x16x16xf32> to vector<2x16x16xf32>
    %cst_3 = arith.constant 4.000000e+00 : f32
    %2 = vector.broadcast %cst_3 : f32 to vector<2x16x16xf32>
    %3 = arith.divf %1, %2 : vector<2x16x16xf32>
    %cst_4 = arith.constant dense<0xFF800000> : vector<2x16x16xf32>
    %4 = vector.multi_reduction <maximumf>, %0, %cst_4 [1] : vector<2x4x16x16xf32> to vector<2x16x16xf32>
    %5 = tpu.concatenate %3, %4 in 2 : vector<2x16x16xf32>, vector<2x16x16xf32> -> vector<2x16x32xf32>
    %6 = vector.shape_cast %5 : vector<2x16x32xf32> to vector<32x32xf32>
    %7 = tpu.iota {dimensions = array<i32: 0>} : vector<32x1xi32>
    %c16_i32 = arith.constant 16 : i32
    %c0_i32 = arith.constant 0 : i32
    %8 = arith.cmpi eq, %c16_i32, %c0_i32 : i32
    %c1_i32 = arith.constant 1 : i32
    %9 = arith.select %8, %c1_i32, %c16_i32 : i32
    %10 = vector.broadcast %9 : i32 to vector<32x1xi32>
    %11 = arith.remsi %7, %10 : vector<32x1xi32>
    %c0_i32_5 = arith.constant 0 : i32
    %12 = vector.broadcast %c0_i32_5 : i32 to vector<32x1xi32>
    %13 = arith.cmpi ne, %11, %12 : vector<32x1xi32>
    %c0_i32_6 = arith.constant 0 : i32
    %14 = vector.broadcast %c0_i32_6 : i32 to vector<32x1xi32>
    %15 = arith.cmpi slt, %11, %14 : vector<32x1xi32>
    %c0_i32_7 = arith.constant 0 : i32
    %16 = arith.cmpi slt, %9, %c0_i32_7 : i32
    %17 = vector.broadcast %16 : i1 to vector<32x1xi1>
    %18 = vector.broadcast %17 : vector<32x1xi1> to vector<32x1xi1>
    %19 = arith.xori %15, %18 : vector<32x1xi1>
    %20 = arith.andi %19, %13 : vector<32x1xi1>
    %21 = vector.broadcast %9 : i32 to vector<32x1xi32>
    %22 = arith.addi %11, %21 : vector<32x1xi32>
    %23 = arith.select %20, %22, %11 : vector<32x1xi1>, vector<32x1xi32>
    %c0_8 = arith.constant 0 : index
    %24 = memref.load %arg2[%c0_8] : memref<1xf32, #tpu.memory_space<smem>>
    %25 = vector.broadcast %24 : f32 to vector<32x16xf32>
    %c3_i32 = arith.constant 3 : i32
    %26 = tpu.dynamic_rotate %6 by %c3_i32 dim 0 : vector<32x32xf32>, i32 -> vector<32x32xf32>
    %c-3_i32 = arith.constant -3 : i32
    %27 = vector.broadcast %c-3_i32 : i32 to vector<32x1xi32>
    %28 = arith.addi %23, %27 : vector<32x1xi32>
    %c0_i32_9 = arith.constant 0 : i32
    %29 = vector.broadcast %c0_i32_9 : i32 to vector<32x1xi32>
    %30 = arith.cmpi sge, %28, %29 : vector<32x1xi32>
    %c-3_i32_10 = arith.constant -3 : i32
    %31 = vector.broadcast %c-3_i32_10 : i32 to vector<32x1xi32>
    %32 = arith.addi %23, %31 : vector<32x1xi32>
    %c16_i32_11 = arith.constant 16 : i32
    %33 = vector.broadcast %c16_i32_11 : i32 to vector<32x1xi32>
    %34 = arith.cmpi slt, %32, %33 : vector<32x1xi32>
    %35 = arith.andi %30, %34 : vector<32x1xi1>
    %cst_12 = arith.constant 0.000000e+00 : f32
    %36 = vector.shape_cast %35 : vector<32x1xi1> to vector<32x1xi1>
    %37 = vector.broadcast %36 : vector<32x1xi1> to vector<32x32xi1>
    %38 = vector.broadcast %cst_12 : f32 to vector<32x32xf32>
    %39 = arith.select %37, %26, %38 : vector<32x32xi1>, vector<32x32xf32>
    %c0_13 = arith.constant 0 : index
    %c0_14 = arith.constant 0 : index
    %c0_15 = arith.constant 0 : index
    %40 = vector.load %arg1[%c0_13, %c0_14, %c0_15] : memref<7x32x16xf32, #tpu.memory_space<vmem>>, vector<1x32x16xf32>
    %41 = vector.shape_cast %40 : vector<1x32x16xf32> to vector<32x16xf32>
    %cst_16 = arith.constant dense<0.000000e+00> : vector<32x16xf32>
    %42 = tpu.matmul %39, %41, %cst_16 {dimension_numbers = #tpu.dot_dimension_numbers<[1], [0], [0], [1], [0, 0, 1, 1], [], []>} : vector<32x32xf32>, vector<32x16xf32>, vector<32x16xf32> -> vector<32x16xf32>
    %43 = arith.addf %25, %42 : vector<32x16xf32>
    %c2_i32 = arith.constant 2 : i32
    %44 = tpu.dynamic_rotate %6 by %c2_i32 dim 0 : vector<32x32xf32>, i32 -> vector<32x32xf32>
    %c-2_i32 = arith.constant -2 : i32
    %45 = vector.broadcast %c-2_i32 : i32 to vector<32x1xi32>
    %46 = arith.addi %23, %45 : vector<32x1xi32>
    %c0_i32_17 = arith.constant 0 : i32
    %47 = vector.broadcast %c0_i32_17 : i32 to vector<32x1xi32>
    %48 = arith.cmpi sge, %46, %47 : vector<32x1xi32>
    %c-2_i32_18 = arith.constant -2 : i32
    %49 = vector.broadcast %c-2_i32_18 : i32 to vector<32x1xi32>
    %50 = arith.addi %23, %49 : vector<32x1xi32>
    %c16_i32_19 = arith.constant 16 : i32
    %51 = vector.broadcast %c16_i32_19 : i32 to vector<32x1xi32>
    %52 = arith.cmpi slt, %50, %51 : vector<32x1xi32>
    %53 = arith.andi %48, %52 : vector<32x1xi1>
    %cst_20 = arith.constant 0.000000e+00 : f32
    %54 = vector.shape_cast %53 : vector<32x1xi1> to vector<32x1xi1>
    %55 = vector.broadcast %54 : vector<32x1xi1> to vector<32x32xi1>
    %56 = vector.broadcast %cst_20 : f32 to vector<32x32xf32>
    %57 = arith.select %55, %44, %56 : vector<32x32xi1>, vector<32x32xf32>
    %c1 = arith.constant 1 : index
    %c0_21 = arith.constant 0 : index
    %c0_22 = arith.constant 0 : index
    %58 = vector.load %arg1[%c1, %c0_21, %c0_22] : memref<7x32x16xf32, #tpu.memory_space<vmem>>, vector<1x32x16xf32>
    %59 = vector.shape_cast %58 : vector<1x32x16xf32> to vector<32x16xf32>
    %cst_23 = arith.constant dense<0.000000e+00> : vector<32x16xf32>
    %60 = tpu.matmul %57, %59, %cst_23 {dimension_numbers = #tpu.dot_dimension_numbers<[1], [0], [0], [1], [0, 0, 1, 1], [], []>} : vector<32x32xf32>, vector<32x16xf32>, vector<32x16xf32> -> vector<32x16xf32>
    %61 = arith.addf %43, %60 : vector<32x16xf32>
    %c1_i32_24 = arith.constant 1 : i32
    %62 = tpu.dynamic_rotate %6 by %c1_i32_24 dim 0 : vector<32x32xf32>, i32 -> vector<32x32xf32>
    %c-1_i32 = arith.constant -1 : i32
    %63 = vector.broadcast %c-1_i32 : i32 to vector<32x1xi32>
    %64 = arith.addi %23, %63 : vector<32x1xi32>
    %c0_i32_25 = arith.constant 0 : i32
    %65 = vector.broadcast %c0_i32_25 : i32 to vector<32x1xi32>
    %66 = arith.cmpi sge, %64, %65 : vector<32x1xi32>
    %c-1_i32_26 = arith.constant -1 : i32
    %67 = vector.broadcast %c-1_i32_26 : i32 to vector<32x1xi32>
    %68 = arith.addi %23, %67 : vector<32x1xi32>
    %c16_i32_27 = arith.constant 16 : i32
    %69 = vector.broadcast %c16_i32_27 : i32 to vector<32x1xi32>
    %70 = arith.cmpi slt, %68, %69 : vector<32x1xi32>
    %71 = arith.andi %66, %70 : vector<32x1xi1>
    %cst_28 = arith.constant 0.000000e+00 : f32
    %72 = vector.shape_cast %71 : vector<32x1xi1> to vector<32x1xi1>
    %73 = vector.broadcast %72 : vector<32x1xi1> to vector<32x32xi1>
    %74 = vector.broadcast %cst_28 : f32 to vector<32x32xf32>
    %75 = arith.select %73, %62, %74 : vector<32x32xi1>, vector<32x32xf32>
    %c2 = arith.constant 2 : index
    %c0_29 = arith.constant 0 : index
    %c0_30 = arith.constant 0 : index
    %76 = vector.load %arg1[%c2, %c0_29, %c0_30] : memref<7x32x16xf32, #tpu.memory_space<vmem>>, vector<1x32x16xf32>
    %77 = vector.shape_cast %76 : vector<1x32x16xf32> to vector<32x16xf32>
    %cst_31 = arith.constant dense<0.000000e+00> : vector<32x16xf32>
    %78 = tpu.matmul %75, %77, %cst_31 {dimension_numbers = #tpu.dot_dimension_numbers<[1], [0], [0], [1], [0, 0, 1, 1], [], []>} : vector<32x32xf32>, vector<32x16xf32>, vector<32x16xf32> -> vector<32x16xf32>
    %79 = arith.addf %61, %78 : vector<32x16xf32>
    %c0_i32_32 = arith.constant 0 : i32
    %80 = vector.broadcast %c0_i32_32 : i32 to vector<32x1xi32>
    %81 = arith.addi %23, %80 : vector<32x1xi32>
    %c0_i32_33 = arith.constant 0 : i32
    %82 = vector.broadcast %c0_i32_33 : i32 to vector<32x1xi32>
    %83 = arith.cmpi sge, %81, %82 : vector<32x1xi32>
    %c0_i32_34 = arith.constant 0 : i32
    %84 = vector.broadcast %c0_i32_34 : i32 to vector<32x1xi32>
    %85 = arith.addi %23, %84 : vector<32x1xi32>
    %c16_i32_35 = arith.constant 16 : i32
    %86 = vector.broadcast %c16_i32_35 : i32 to vector<32x1xi32>
    %87 = arith.cmpi slt, %85, %86 : vector<32x1xi32>
    %88 = arith.andi %83, %87 : vector<32x1xi1>
    %cst_36 = arith.constant 0.000000e+00 : f32
    %89 = vector.shape_cast %88 : vector<32x1xi1> to vector<32x1xi1>
    %90 = vector.broadcast %89 : vector<32x1xi1> to vector<32x32xi1>
    %91 = vector.broadcast %cst_36 : f32 to vector<32x32xf32>
    %92 = arith.select %90, %6, %91 : vector<32x32xi1>, vector<32x32xf32>
    %c3 = arith.constant 3 : index
    %c0_37 = arith.constant 0 : index
    %c0_38 = arith.constant 0 : index
    %93 = vector.load %arg1[%c3, %c0_37, %c0_38] : memref<7x32x16xf32, #tpu.memory_space<vmem>>, vector<1x32x16xf32>
    %94 = vector.shape_cast %93 : vector<1x32x16xf32> to vector<32x16xf32>
    %cst_39 = arith.constant dense<0.000000e+00> : vector<32x16xf32>
    %95 = tpu.matmul %92, %94, %cst_39 {dimension_numbers = #tpu.dot_dimension_numbers<[1], [0], [0], [1], [0, 0, 1, 1], [], []>} : vector<32x32xf32>, vector<32x16xf32>, vector<32x16xf32> -> vector<32x16xf32>
    %96 = arith.addf %79, %95 : vector<32x16xf32>
    %c31_i32 = arith.constant 31 : i32
    %97 = tpu.dynamic_rotate %6 by %c31_i32 dim 0 : vector<32x32xf32>, i32 -> vector<32x32xf32>
    %c1_i32_40 = arith.constant 1 : i32
    %98 = vector.broadcast %c1_i32_40 : i32 to vector<32x1xi32>
    %99 = arith.addi %23, %98 : vector<32x1xi32>
    %c0_i32_41 = arith.constant 0 : i32
    %100 = vector.broadcast %c0_i32_41 : i32 to vector<32x1xi32>
    %101 = arith.cmpi sge, %99, %100 : vector<32x1xi32>
    %c1_i32_42 = arith.constant 1 : i32
    %102 = vector.broadcast %c1_i32_42 : i32 to vector<32x1xi32>
    %103 = arith.addi %23, %102 : vector<32x1xi32>
    %c16_i32_43 = arith.constant 16 : i32
    %104 = vector.broadcast %c16_i32_43 : i32 to vector<32x1xi32>
    %105 = arith.cmpi slt, %103, %104 : vector<32x1xi32>
    %106 = arith.andi %101, %105 : vector<32x1xi1>
    %cst_44 = arith.constant 0.000000e+00 : f32
    %107 = vector.shape_cast %106 : vector<32x1xi1> to vector<32x1xi1>
    %108 = vector.broadcast %107 : vector<32x1xi1> to vector<32x32xi1>
    %109 = vector.broadcast %cst_44 : f32 to vector<32x32xf32>
    %110 = arith.select %108, %97, %109 : vector<32x32xi1>, vector<32x32xf32>
    %c4 = arith.constant 4 : index
    %c0_45 = arith.constant 0 : index
    %c0_46 = arith.constant 0 : index
    %111 = vector.load %arg1[%c4, %c0_45, %c0_46] : memref<7x32x16xf32, #tpu.memory_space<vmem>>, vector<1x32x16xf32>
    %112 = vector.shape_cast %111 : vector<1x32x16xf32> to vector<32x16xf32>
    %cst_47 = arith.constant dense<0.000000e+00> : vector<32x16xf32>
    %113 = tpu.matmul %110, %112, %cst_47 {dimension_numbers = #tpu.dot_dimension_numbers<[1], [0], [0], [1], [0, 0, 1, 1], [], []>} : vector<32x32xf32>, vector<32x16xf32>, vector<32x16xf32> -> vector<32x16xf32>
    %114 = arith.addf %96, %113 : vector<32x16xf32>
    %c30_i32 = arith.constant 30 : i32
    %115 = tpu.dynamic_rotate %6 by %c30_i32 dim 0 : vector<32x32xf32>, i32 -> vector<32x32xf32>
    %c2_i32_48 = arith.constant 2 : i32
    %116 = vector.broadcast %c2_i32_48 : i32 to vector<32x1xi32>
    %117 = arith.addi %23, %116 : vector<32x1xi32>
    %c0_i32_49 = arith.constant 0 : i32
    %118 = vector.broadcast %c0_i32_49 : i32 to vector<32x1xi32>
    %119 = arith.cmpi sge, %117, %118 : vector<32x1xi32>
    %c2_i32_50 = arith.constant 2 : i32
    %120 = vector.broadcast %c2_i32_50 : i32 to vector<32x1xi32>
    %121 = arith.addi %23, %120 : vector<32x1xi32>
    %c16_i32_51 = arith.constant 16 : i32
    %122 = vector.broadcast %c16_i32_51 : i32 to vector<32x1xi32>
    %123 = arith.cmpi slt, %121, %122 : vector<32x1xi32>
    %124 = arith.andi %119, %123 : vector<32x1xi1>
    %cst_52 = arith.constant 0.000000e+00 : f32
    %125 = vector.shape_cast %124 : vector<32x1xi1> to vector<32x1xi1>
    %126 = vector.broadcast %125 : vector<32x1xi1> to vector<32x32xi1>
    %127 = vector.broadcast %cst_52 : f32 to vector<32x32xf32>
    %128 = arith.select %126, %115, %127 : vector<32x32xi1>, vector<32x32xf32>
    %c5 = arith.constant 5 : index
    %c0_53 = arith.constant 0 : index
    %c0_54 = arith.constant 0 : index
    %129 = vector.load %arg1[%c5, %c0_53, %c0_54] : memref<7x32x16xf32, #tpu.memory_space<vmem>>, vector<1x32x16xf32>
    %130 = vector.shape_cast %129 : vector<1x32x16xf32> to vector<32x16xf32>
    %cst_55 = arith.constant dense<0.000000e+00> : vector<32x16xf32>
    %131 = tpu.matmul %128, %130, %cst_55 {dimension_numbers = #tpu.dot_dimension_numbers<[1], [0], [0], [1], [0, 0, 1, 1], [], []>} : vector<32x32xf32>, vector<32x16xf32>, vector<32x16xf32> -> vector<32x16xf32>
    %132 = arith.addf %114, %131 : vector<32x16xf32>
    %c29_i32 = arith.constant 29 : i32
    %133 = tpu.dynamic_rotate %6 by %c29_i32 dim 0 : vector<32x32xf32>, i32 -> vector<32x32xf32>
    %c3_i32_56 = arith.constant 3 : i32
    %134 = vector.broadcast %c3_i32_56 : i32 to vector<32x1xi32>
    %135 = arith.addi %23, %134 : vector<32x1xi32>
    %c0_i32_57 = arith.constant 0 : i32
    %136 = vector.broadcast %c0_i32_57 : i32 to vector<32x1xi32>
    %137 = arith.cmpi sge, %135, %136 : vector<32x1xi32>
    %c3_i32_58 = arith.constant 3 : i32
    %138 = vector.broadcast %c3_i32_58 : i32 to vector<32x1xi32>
    %139 = arith.addi %23, %138 : vector<32x1xi32>
    %c16_i32_59 = arith.constant 16 : i32
    %140 = vector.broadcast %c16_i32_59 : i32 to vector<32x1xi32>
    %141 = arith.cmpi slt, %139, %140 : vector<32x1xi32>
    %142 = arith.andi %137, %141 : vector<32x1xi1>
    %cst_60 = arith.constant 0.000000e+00 : f32
    %143 = vector.shape_cast %142 : vector<32x1xi1> to vector<32x1xi1>
    %144 = vector.broadcast %143 : vector<32x1xi1> to vector<32x32xi1>
    %145 = vector.broadcast %cst_60 : f32 to vector<32x32xf32>
    %146 = arith.select %144, %133, %145 : vector<32x32xi1>, vector<32x32xf32>
    %c6 = arith.constant 6 : index
    %c0_61 = arith.constant 0 : index
    %c0_62 = arith.constant 0 : index
    %147 = vector.load %arg1[%c6, %c0_61, %c0_62] : memref<7x32x16xf32, #tpu.memory_space<vmem>>, vector<1x32x16xf32>
    %148 = vector.shape_cast %147 : vector<1x32x16xf32> to vector<32x16xf32>
    %cst_63 = arith.constant dense<0.000000e+00> : vector<32x16xf32>
    %149 = tpu.matmul %146, %148, %cst_63 {dimension_numbers = #tpu.dot_dimension_numbers<[1], [0], [0], [1], [0, 0, 1, 1], [], []>} : vector<32x32xf32>, vector<32x16xf32>, vector<32x16xf32> -> vector<32x16xf32>
    %150 = arith.addf %132, %149 : vector<32x16xf32>
    %151 = arith.negf %150 : vector<32x16xf32>
    %152 = math.exp %151 : vector<32x16xf32>
    %cst_64 = arith.constant 1.000000e+00 : f32
    %153 = vector.broadcast %cst_64 : f32 to vector<32x16xf32>
    %154 = arith.addf %153, %152 : vector<32x16xf32>
    %155 = arith.divf %153, %154 : vector<32x16xf32>
    %c0_65 = arith.constant 0 : index
    %c0_66 = arith.constant 0 : index
    %156 = vector.load %arg4[%c0_65, %c0_66] : memref<32x16xf32, #tpu.memory_space<vmem>>, vector<32x16xf32>
    tpu.vector_store %arg4[%c0_65, %c0_66], %155 {strides = array<i32>} : memref<32x16xf32, #tpu.memory_space<vmem>>, vector<32x16xf32>,
    return
  }
  func.func @transform_0(%arg0: i32) -> (i32, i32, i32) {
    %c0_i32 = arith.constant 0 : i32
    %c0_i32_0 = arith.constant 0 : i32
    %c0_i32_1 = arith.constant 0 : i32
    %c0_i32_2 = arith.constant 0 : i32
    return %c0_i32, %c0_i32_0, %c0_i32_1 : i32, i32, i32
  }
  func.func @transform_1(%arg0: i32) -> i32 {
    %c0_i32 = arith.constant 0 : i32
    %c0_i32_0 = arith.constant 0 : i32
    return %c0_i32 : i32
  }
  func.func @transform_2(%arg0: i32) -> (i32, i32, i32, i32) {
    %c0_i32 = arith.constant 0 : i32
    %c0_i32_0 = arith.constant 0 : i32
    %c0_i32_1 = arith.constant 0 : i32
    %c0_i32_2 = arith.constant 0 : i32
    return %arg0, %c0_i32, %c0_i32_0, %c0_i32_1 : i32, i32, i32, i32
  }
  func.func @transform_3(%arg0: i32) -> (i32, i32) {
    %c0_i32 = arith.constant 0 : i32
    %c0_i32_0 = arith.constant 0 : i32
    return %arg0, %c0_i32 : i32, i32
  }
}

</mosaic_0001>

<llo_original>
// kernel: tpu_custom_call.1
$region0: #{tpu_custom_call.1}
  #allocation0 [shape = 'u32[]', space=smem, size = 0x4, offset = 0x4, fixed_abs, tag = 'smem constant byte address 0x4 - core index']
  #allocation1 [shape = 'u32[72,128]{1,0:T(1,128)}', space=vmem, size = 0x9000, scoped, tag = 'internal scratch']
  #allocation2 [shape = 'f32[1]{0:T(128)S(6)}', space=smem, size = 0x200, scoped, tag = 'scoped memory for tpu_custom_call.1']
  %s0 = inlined_call_operand.vmem [shape: f32[7,32,16], index: 0, kind: input, shape index: {}]
  %s1 = inlined_call_operand.<no memory space> [shape: f32[1], index: 1, kind: input, shape index: {}]
  %s2 = inlined_call_operand.vmem [shape: f32[2,4,16,16], index: 2, kind: input, shape index: {}]
  %s3 = inlined_call_operand.vmem [shape: f32[32,16], index: 3, kind: output, shape index: {}]
  %s4 = sld [smem:[#allocation0]]
  $region22: #{tpu_custom_call.1} parent=0
    _
  %s6 = ssub.s32 1, %s4
  %s7 = scalar_select 0, %s6, %s4
  %8 = sst [smem:[#allocation2]] %s1
  // Predicated region
  $region2: #{tpu_custom_call.1} parent=0 // pred_check
    _
  $region3: #{tpu_custom_call.1} parent=0 // pred_check_branch
    %10 = sbr.rel (0) target = $region5
  $region4: #{tpu_custom_call.1} parent=0 // pred_region
    _
  $region5: #{tpu_custom_call.1} parent=0 // pred_fallthru
    _
  // Predicated region
  $region6: #{tpu_custom_call.1} parent=0 // pred_check
    _
  $region7: #{tpu_custom_call.1} parent=0 // pred_check_branch
    %12 = sbr.rel (0) target = $region9
  $region8: #{tpu_custom_call.1} parent=0 // pred_region
    _
  $region9: #{tpu_custom_call.1} parent=0 // pred_fallthru
    _
  // Predicated region
  $region10: #{tpu_custom_call.1} parent=0 // pred_check
    _
  $region11: #{tpu_custom_call.1} parent=0 // pred_check_branch
    %14 = sbr.rel (0) target = $region13
  $region12: #{tpu_custom_call.1} parent=0 // pred_region
    _
  $region13: #{tpu_custom_call.1} parent=0 // pred_fallthru
    _
  %v15 = vld [vmem:[%s2] sm:$0xff]
  %v16 = vld [vmem:[%s2 + $0x8] sm:$0xff]
  %v17 = vld [vmem:[%s2 + $0x10] sm:$0xff]
  %v18 = vld [vmem:[%s2 + $0x18] sm:$0xff]
  %v19 = vld [vmem:[%s2 + $0x20] sm:$0xff]
  %v20 = vld [vmem:[%s2 + $0x28] sm:$0xff]
  %v21 = vld [vmem:[%s2 + $0x30] sm:$0xff]
  %v22 = vld [vmem:[%s2 + $0x38] sm:$0xff]
  %v23 = vld [vmem:[%s2 + $0x40] sm:$0xff]
  %v24 = vld [vmem:[%s2 + $0x48] sm:$0xff]
  %v25 = vld [vmem:[%s2 + $0x50] sm:$0xff]
  %v26 = vld [vmem:[%s2 + $0x58] sm:$0xff]
  %v27 = vld [vmem:[%s2 + $0x60] sm:$0xff]
  %v28 = vld [vmem:[%s2 + $0x68] sm:$0xff]
  %v29 = vld [vmem:[%s2 + $0x70] sm:$0xff]
  %v30 = vld [vmem:[%s2 + $0x78] sm:$0xff]
  %vm31 = vcmask 130048
  %v32 = vsel %vm31, %v15, 0.0
  %v33 = vsel %vm31, %v17, 0.0
  %v34 = vadd.f32 %v32, %v33
  %v35 = vsel %vm31, %v19, 0.0
  %v36 = vadd.f32 %v34, %v35
  %v37 = vsel %vm31, %v21, 0.0
  %v38 = vadd.f32 %v36, %v37
  %v39 = vsel %vm31, %v16, 0.0
  %v40 = vsel %vm31, %v18, 0.0
  %v41 = vadd.f32 %v39, %v40
  %v42 = vsel %vm31, %v20, 0.0
  %v43 = vadd.f32 %v41, %v42
  %v44 = vsel %vm31, %v22, 0.0
  %v45 = vadd.f32 %v43, %v44
  %v46 = vsel %vm31, %v23, 0.0
  %v47 = vsel %vm31, %v25, 0.0
  %v48 = vadd.f32 %v46, %v47
  %v49 = vsel %vm31, %v27, 0.0
  %v50 = vadd.f32 %v48, %v49
  %v51 = vsel %vm31, %v29, 0.0
  %v52 = vadd.f32 %v50, %v51
  %v53 = vsel %vm31, %v24, 0.0
  %v54 = vsel %vm31, %v26, 0.0
  %v55 = vadd.f32 %v53, %v54
  %v56 = vsel %vm31, %v28, 0.0
  %v57 = vadd.f32 %v55, %v56
  %v58 = vsel %vm31, %v30, 0.0
  %v59 = vadd.f32 %v57, %v58
  %v60 = vrcp.pop 4.0
  %v61 = vmul.f32 4.0, %v60
  %v62 = vsub.f32 1.0, %v61
  %v63 = vmul.f32 %v60, %v62
  %v64 = vadd.f32 %v60, %v63
  %vm65 = vweird.f32 %v60
  %v66 = vsel %vm65, %v60, %v64
  %v67 = vmul.f32 %v38, %v66
  %v68 = vmul.f32 %v45, %v66
  %v69 = vmul.f32 %v52, %v66
  %v70 = vmul.f32 %v59, %v66
  %v71 = vsel %vm31, %v15, -inf
  %v72 = vsel %vm31, %v17, -inf
  %v73 = vmax.f32 %v71, %v72
  %v74 = vsel %vm31, %v19, -inf
  %v75 = vmax.f32 %v73, %v74
  %v76 = vsel %vm31, %v21, -inf
  %v77 = vmax.f32 %v75, %v76
  %v78 = vsel %vm31, %v16, -inf
  %v79 = vsel %vm31, %v18, -inf
  %v80 = vmax.f32 %v78, %v79
  %v81 = vsel %vm31, %v20, -inf
  %v82 = vmax.f32 %v80, %v81
  %v83 = vsel %vm31, %v22, -inf
  %v84 = vmax.f32 %v82, %v83
  %v85 = vsel %vm31, %v23, -inf
  %v86 = vsel %vm31, %v25, -inf
  %v87 = vmax.f32 %v85, %v86
  %v88 = vsel %vm31, %v27, -inf
  %v89 = vmax.f32 %v87, %v88
  %v90 = vsel %vm31, %v29, -inf
  %v91 = vmax.f32 %v89, %v90
  %v92 = vsel %vm31, %v24, -inf
  %v93 = vsel %vm31, %v26, -inf
  %v94 = vmax.f32 %v92, %v93
  %v95 = vsel %vm31, %v28, -inf
  %v96 = vmax.f32 %v94, %v95
  %v97 = vsel %vm31, %v30, -inf
  %v98 = vmax.f32 %v96, %v97
  %103 = vrot.lane.b32.xlu0 %v77, 16
  %v104 = vpop.permute.xlu0 %103
  %105 = vrot.lane.b32.xlu0 %v84, 16
  %v106 = vpop.permute.xlu0 %105
  %107 = vrot.lane.b32.xlu0 %v91, 16
  %v108 = vpop.permute.xlu0 %107
  %109 = vrot.lane.b32.xlu0 %v98, 16
  %v110 = vpop.permute.xlu0 %109
  %v115 = vsel %vm31, %v67, %v104
  %v116 = vsel %vm31, %v68, %v106
  %v117 = vsel %vm31, %v69, %v108
  %v118 = vsel %vm31, %v70, %v110
  %v119 = vlaneseq
  %v120 = vshrl.u32 %v119, 7
  %v121 = vadd.s32 %v120, 8
  %v122 = vadd.s32 %v120, 16
  %v123 = vadd.s32 %v120, 24
  %vm124 = vcmp.lt.s32.totalorder %v120, 0
  %v125 = vsub.s32 0, %v120
  %v126 = vsel %vm124, %v125, %v120
  %v127 = vshrl.u32 %v126, 4
  %v128 = vand.u32 %v126, 15
  %v129 = vsub.s32 0, %v128
  %v130 = vsel %vm124, %v129, %v128
  %vm131 = vcmp.lt.s32.totalorder %v121, 0
  %v132 = vsub.s32 0, %v121
  %v133 = vsel %vm131, %v132, %v121
  %v134 = vshrl.u32 %v133, 4
  %v135 = vand.u32 %v133, 15
  %v136 = vsub.s32 0, %v135
  %v137 = vsel %vm131, %v136, %v135
  %vm138 = vcmp.lt.s32.totalorder %v122, 0
  %v139 = vsub.s32 0, %v122
  %v140 = vsel %vm138, %v139, %v122
  %v141 = vshrl.u32 %v140, 4
  %v142 = vand.u32 %v140, 15
  %v143 = vsub.s32 0, %v142
  %v144 = vsel %vm138, %v143, %v142
  %vm145 = vcmp.lt.s32.totalorder %v123, 0
  %v146 = vsub.s32 0, %v123
  %v147 = vsel %vm145, %v146, %v123
  %v148 = vshrl.u32 %v147, 4
  %v149 = vand.u32 %v147, 15
  %v150 = vsub.s32 0, %v149
  %v151 = vsel %vm145, %v150, %v149
  %vm152 = vcmp.ne.s32.totalorder %v130, 0
  %vm153 = vcmp.ne.s32.totalorder %v137, 0
  %vm154 = vcmp.ne.s32.totalorder %v144, 0
  %vm155 = vcmp.ne.s32.totalorder %v151, 0
  %vm156 = vcmp.lt.s32.totalorder %v130, 0
  %vm157 = vcmp.lt.s32.totalorder %v137, 0
  %vm158 = vcmp.lt.s32.totalorder %v144, 0
  %vm159 = vcmp.lt.s32.totalorder %v151, 0
  %vm160 = vmand %vm156, %vm152
  %vm161 = vmand %vm157, %vm153
  %vm162 = vmand %vm158, %vm154
  %vm163 = vmand %vm159, %vm155
  %v164 = vadd.s32 %v130, 16
  %v165 = vadd.s32 %v137, 16
  %v166 = vadd.s32 %v144, 16
  %v167 = vadd.s32 %v151, 16
  %v168 = vsel %vm160, %v164, %v130
  %v169 = vsel %vm161, %v165, %v137
  %v170 = vsel %vm162, %v166, %v144
  %v171 = vsel %vm163, %v167, %v151
  %s172 = sld [smem:[#allocation2]]
  %v173 = vstv %s172
  %v174 = vrot.slane %v115, 5
  %v175 = vrot.slane %v116, 5
  %v176 = vrot.slane %v117, 5
  %v177 = vrot.slane %v118, 5
  %vm178 = vcmp.lt.s32.totalorder %v120, 3
  %v179 = vsel %vm178, %v176, %v177
  %v180 = vsel %vm178, %v175, %v176
  %v181 = vsel %vm178, %v174, %v175
  %v182 = vsel %vm178, %v177, %v174
  %v183 = vadd.s32 %v168, 4294967293
  %v184 = vadd.s32 %v169, 4294967293
  %v185 = vadd.s32 %v170, 4294967293
  %v186 = vadd.s32 %v171, 4294967293
  %vm187 = vcmp.ge.s32.totalorder %v183, 0
  %vm188 = vcmp.ge.s32.totalorder %v184, 0
  %vm189 = vcmp.ge.s32.totalorder %v185, 0
  %vm190 = vcmp.ge.s32.totalorder %v186, 0
  %vm191 = vcmp.lt.s32.totalorder %v183, 16
  %vm192 = vcmp.lt.s32.totalorder %v184, 16
  %vm193 = vcmp.lt.s32.totalorder %v185, 16
  %vm194 = vcmp.lt.s32.totalorder %v186, 16
  %vm195 = vmand %vm187, %vm191
  %vm196 = vmand %vm188, %vm192
  %vm197 = vmand %vm189, %vm193
  %vm198 = vmand %vm190, %vm194
  %v199 = vsel %vm195, 1, 0
  %v200 = vsel %vm196, 1, 0
  %v201 = vsel %vm197, 1, 0
  %v202 = vsel %vm198, 1, 0
  %vm203 = vcmp.eq.s32.totalorder %v199, 1
  %vm204 = vcmp.eq.s32.totalorder %v200, 1
  %vm205 = vcmp.eq.s32.totalorder %v201, 1
  %vm206 = vcmp.eq.s32.totalorder %v202, 1
  %v207 = vsel %vm203, %v182, 0.0
  %v208 = vsel %vm204, %v181, 0.0
  %v209 = vsel %vm205, %v180, 0.0
  %v210 = vsel %vm206, %v179, 0.0
  %v211 = vld [vmem:[%s0] sm:$0xff]
  %v212 = vld [vmem:[%s0 + $0x8] sm:$0xff]
  %v213 = vld [vmem:[%s0 + $0x10] sm:$0xff]
  %v214 = vld [vmem:[%s0 + $0x18] sm:$0xff]
  %vm215 = vcmask 261120
  %v217 = vsel %vm215, %v207, 0
  %v220 = vsel %vm215, %v208, 0
  %v223 = vsel %vm215, %v209, 0
  %v226 = vsel %vm215, %v210, 0
  %228 = vmatpush.msra.mxu0 0.0
  %229 = vmatpush.msra.mxu0 0.0
  %230 = vmatpush.msra.mxu0 0.0
  %231 = vmatpush.msra.mxu0 0.0
  %232 = vmatpush.msra.mxu0 0.0
  %233 = vmatpush.msra.mxu0 0.0
  %234 = vmatpush.msra.mxu0 0.0
  %235 = vmatpush.msra.mxu0 0.0
  %236 = vmatpush.msra.mxu0 0.0
  %237 = vmatpush.msra.mxu0 0.0
  %238 = vmatpush.msra.mxu0 0.0
  %239 = vmatpush.msra.mxu0 0.0
  %240 = vmatpush.msra.mxu0 %v214
  %241 = vmatpush.msra.mxu0 %v213
  %242 = vmatpush.msra.mxu0 %v212
  %243 = vmatpush.msra.mxu0 %v211
  %244 = vmatmul.f32.gmra.mxu0 %v217
  %v245 = vpop.f32.mrf.mxu0
  %v246 = vadd.f32 0.0, %v245
  %247 = vmatmul.f32.gmra.mxu0 %v220
  %v248 = vpop.f32.mrf.mxu0
  %v249 = vadd.f32 0.0, %v248
  %250 = vmatmul.f32.gmra.mxu0 %v223
  %v251 = vpop.f32.mrf.mxu0
  %v252 = vadd.f32 0.0, %v251
  %253 = vmatmul.f32.gmra.mxu0 %v226
  %v254 = vpop.f32.mrf.mxu0
  %v255 = vadd.f32 0.0, %v254
  %256 = vdwg.mxu0
  %v257 = vadd.f32 %v173, %v246
  %v258 = vadd.f32 %v173, %v249
  %v259 = vadd.f32 %v173, %v252
  %v260 = vadd.f32 %v173, %v255
  %v261 = vrot.slane %v115, 6
  %v262 = vrot.slane %v116, 6
  %v263 = vrot.slane %v117, 6
  %v264 = vrot.slane %v118, 6
  %vm265 = vcmp.lt.s32.totalorder %v120, 2
  %v266 = vsel %vm265, %v263, %v264
  %v267 = vsel %vm265, %v262, %v263
  %v268 = vsel %vm265, %v261, %v262
  %v269 = vsel %vm265, %v264, %v261
  %v270 = vadd.s32 %v168, 4294967294
  %v271 = vadd.s32 %v169, 4294967294
  %v272 = vadd.s32 %v170, 4294967294
  %v273 = vadd.s32 %v171, 4294967294
  %vm274 = vcmp.ge.s32.totalorder %v270, 0
  %vm275 = vcmp.ge.s32.totalorder %v271, 0
  %vm276 = vcmp.ge.s32.totalorder %v272, 0
  %vm277 = vcmp.ge.s32.totalorder %v273, 0
  %vm278 = vcmp.lt.s32.totalorder %v270, 16
  %vm279 = vcmp.lt.s32.totalorder %v271, 16
  %vm280 = vcmp.lt.s32.totalorder %v272, 16
  %vm281 = vcmp.lt.s32.totalorder %v273, 16
  %vm282 = vmand %vm274, %vm278
  %vm283 = vmand %vm275, %vm279
  %vm284 = vmand %vm276, %vm280
  %vm285 = vmand %vm277, %vm281
  %v286 = vsel %vm282, 1, 0
  %v287 = vsel %vm283, 1, 0
  %v288 = vsel %vm284, 1, 0
  %v289 = vsel %vm285, 1, 0
  %vm290 = vcmp.eq.s32.totalorder %v286, 1
  %vm291 = vcmp.eq.s32.totalorder %v287, 1
  %vm292 = vcmp.eq.s32.totalorder %v288, 1
  %vm293 = vcmp.eq.s32.totalorder %v289, 1
  %v294 = vsel %vm290, %v269, 0.0
  %v295 = vsel %vm291, %v268, 0.0
  %v296 = vsel %vm292, %v267, 0.0
  %v297 = vsel %vm293, %v266, 0.0
  %s298 = scalar_lea.vmem %s0, 32
  %v299 = vld [vmem:[%s298] sm:$0xff]
  %v300 = vld [vmem:[%s298 + $0x8] sm:$0xff]
  %v301 = vld [vmem:[%s298 + $0x10] sm:$0xff]
  %v302 = vld [vmem:[%s298 + $0x18] sm:$0xff]
  %v304 = vsel %vm215, %v294, 0
  %v307 = vsel %vm215, %v295, 0
  %v310 = vsel %vm215, %v296, 0
  %v313 = vsel %vm215, %v297, 0
  %315 = vmatpush.msra.mxu0 0.0
  %316 = vmatpush.msra.mxu0 0.0
  %317 = vmatpush.msra.mxu0 0.0
  %318 = vmatpush.msra.mxu0 0.0
  %319 = vmatpush.msra.mxu0 0.0
  %320 = vmatpush.msra.mxu0 0.0
  %321 = vmatpush.msra.mxu0 0.0
  %322 = vmatpush.msra.mxu0 0.0
  %323 = vmatpush.msra.mxu0 0.0
  %324 = vmatpush.msra.mxu0 0.0
  %325 = vmatpush.msra.mxu0 0.0
  %326 = vmatpush.msra.mxu0 0.0
  %327 = vmatpush.msra.mxu0 %v302
  %328 = vmatpush.msra.mxu0 %v301
  %329 = vmatpush.msra.mxu0 %v300
  %330 = vmatpush.msra.mxu0 %v299
  %331 = vmatmul.f32.gmra.mxu0 %v304
  %v332 = vpop.f32.mrf.mxu0
  %v333 = vadd.f32 0.0, %v332
  %334 = vmatmul.f32.gmra.mxu0 %v307
  %v335 = vpop.f32.mrf.mxu0
  %v336 = vadd.f32 0.0, %v335
  %337 = vmatmul.f32.gmra.mxu0 %v310
  %v338 = vpop.f32.mrf.mxu0
  %v339 = vadd.f32 0.0, %v338
  %340 = vmatmul.f32.gmra.mxu0 %v313
  %v341 = vpop.f32.mrf.mxu0
  %v342 = vadd.f32 0.0, %v341
  %343 = vdwg.mxu0
  %v344 = vadd.f32 %v257, %v333
  %v345 = vadd.f32 %v258, %v336
  %v346 = vadd.f32 %v259, %v339
  %v347 = vadd.f32 %v260, %v342
  %v348 = vrot.slane %v115, 7
  %v349 = vrot.slane %v116, 7
  %v350 = vrot.slane %v117, 7
  %v351 = vrot.slane %v118, 7
  %vm352 = vcmp.lt.s32.totalorder %v120, 1
  %v353 = vsel %vm352, %v350, %v351
  %v354 = vsel %vm352, %v349, %v350
  %v355 = vsel %vm352, %v348, %v349
  %v356 = vsel %vm352, %v351, %v348
  %v357 = vadd.s32 %v168, 4294967295
  %v358 = vadd.s32 %v169, 4294967295
  %v359 = vadd.s32 %v170, 4294967295
  %v360 = vadd.s32 %v171, 4294967295
  %vm361 = vcmp.ge.s32.totalorder %v357, 0
  %vm362 = vcmp.ge.s32.totalorder %v358, 0
  %vm363 = vcmp.ge.s32.totalorder %v359, 0
  %vm364 = vcmp.ge.s32.totalorder %v360, 0
  %vm365 = vcmp.lt.s32.totalorder %v357, 16
  %vm366 = vcmp.lt.s32.totalorder %v358, 16
  %vm367 = vcmp.lt.s32.totalorder %v359, 16
  %vm368 = vcmp.lt.s32.totalorder %v360, 16
  %vm369 = vmand %vm361, %vm365
  %vm370 = vmand %vm362, %vm366
  %vm371 = vmand %vm363, %vm367
  %vm372 = vmand %vm364, %vm368
  %v373 = vsel %vm369, 1, 0
  %v374 = vsel %vm370, 1, 0
  %v375 = vsel %vm371, 1, 0
  %v376 = vsel %vm372, 1, 0
  %vm377 = vcmp.eq.s32.totalorder %v373, 1
  %vm378 = vcmp.eq.s32.totalorder %v374, 1
  %vm379 = vcmp.eq.s32.totalorder %v375, 1
  %vm380 = vcmp.eq.s32.totalorder %v376, 1
  %v381 = vsel %vm377, %v356, 0.0
  %v382 = vsel %vm378, %v355, 0.0
  %v383 = vsel %vm379, %v354, 0.0
  %v384 = vsel %vm380, %v353, 0.0
  %s385 = scalar_lea.vmem %s0, 64
  %v386 = vld [vmem:[%s385] sm:$0xff]
  %v387 = vld [vmem:[%s385 + $0x8] sm:$0xff]
  %v388 = vld [vmem:[%s385 + $0x10] sm:$0xff]
  %v389 = vld [vmem:[%s385 + $0x18] sm:$0xff]
  %v391 = vsel %vm215, %v381, 0
  %v394 = vsel %vm215, %v382, 0
  %v397 = vsel %vm215, %v383, 0
  %v400 = vsel %vm215, %v384, 0
  %402 = vmatpush.msra.mxu0 0.0
  %403 = vmatpush.msra.mxu0 0.0
  %404 = vmatpush.msra.mxu0 0.0
  %405 = vmatpush.msra.mxu0 0.0
  %406 = vmatpush.msra.mxu0 0.0
  %407 = vmatpush.msra.mxu0 0.0
  %408 = vmatpush.msra.mxu0 0.0
  %409 = vmatpush.msra.mxu0 0.0
  %410 = vmatpush.msra.mxu0 0.0
  %411 = vmatpush.msra.mxu0 0.0
  %412 = vmatpush.msra.mxu0 0.0
  %413 = vmatpush.msra.mxu0 0.0
  %414 = vmatpush.msra.mxu0 %v389
  %415 = vmatpush.msra.mxu0 %v388
  %416 = vmatpush.msra.mxu0 %v387
  %417 = vmatpush.msra.mxu0 %v386
  %418 = vmatmul.f32.gmra.mxu0 %v391
  %v419 = vpop.f32.mrf.mxu0
  %v420 = vadd.f32 0.0, %v419
  %421 = vmatmul.f32.gmra.mxu0 %v394
  %v422 = vpop.f32.mrf.mxu0
  %v423 = vadd.f32 0.0, %v422
  %424 = vmatmul.f32.gmra.mxu0 %v397
  %v425 = vpop.f32.mrf.mxu0
  %v426 = vadd.f32 0.0, %v425
  %427 = vmatmul.f32.gmra.mxu0 %v400
  %v428 = vpop.f32.mrf.mxu0
  %v429 = vadd.f32 0.0, %v428
  %430 = vdwg.mxu0
  %v431 = vadd.f32 %v344, %v420
  %v432 = vadd.f32 %v345, %v423
  %v433 = vadd.f32 %v346, %v426
  %v434 = vadd.f32 %v347, %v429
  %vm435 = vcmp.ge.s32.totalorder %v168, 0
  %vm436 = vcmp.ge.s32.totalorder %v169, 0
  %vm437 = vcmp.ge.s32.totalorder %v170, 0
  %vm438 = vcmp.ge.s32.totalorder %v171, 0
  %vm439 = vcmp.lt.s32.totalorder %v168, 16
  %vm440 = vcmp.lt.s32.totalorder %v169, 16
  %vm441 = vcmp.lt.s32.totalorder %v170, 16
  %vm442 = vcmp.lt.s32.totalorder %v171, 16
  %vm443 = vmand %vm435, %vm439
  %vm444 = vmand %vm436, %vm440
  %vm445 = vmand %vm437, %vm441
  %vm446 = vmand %vm438, %vm442
  %v447 = vsel %vm443, 1, 0
  %v448 = vsel %vm444, 1, 0
  %v449 = vsel %vm445, 1, 0
  %v450 = vsel %vm446, 1, 0
  %vm451 = vcmp.eq.s32.totalorder %v447, 1
  %vm452 = vcmp.eq.s32.totalorder %v448, 1
  %vm453 = vcmp.eq.s32.totalorder %v449, 1
  %vm454 = vcmp.eq.s32.totalorder %v450, 1
  %v455 = vsel %vm451, %v115, 0.0
  %v456 = vsel %vm452, %v116, 0.0
  %v457 = vsel %vm453, %v117, 0.0
  %v458 = vsel %vm454, %v118, 0.0
  %s459 = scalar_lea.vmem %s0, 96
  %v460 = vld [vmem:[%s459] sm:$0xff]
  %v461 = vld [vmem:[%s459 + $0x8] sm:$0xff]
  %v462 = vld [vmem:[%s459 + $0x10] sm:$0xff]
  %v463 = vld [vmem:[%s459 + $0x18] sm:$0xff]
  %v465 = vsel %vm215, %v455, 0
  %v468 = vsel %vm215, %v456, 0
  %v471 = vsel %vm215, %v457, 0
  %v474 = vsel %vm215, %v458, 0
  %476 = vmatpush.msra.mxu0 0.0
  %477 = vmatpush.msra.mxu0 0.0
  %478 = vmatpush.msra.mxu0 0.0
  %479 = vmatpush.msra.mxu0 0.0
  %480 = vmatpush.msra.mxu0 0.0
  %481 = vmatpush.msra.mxu0 0.0
  %482 = vmatpush.msra.mxu0 0.0
  %483 = vmatpush.msra.mxu0 0.0
  %484 = vmatpush.msra.mxu0 0.0
  %485 = vmatpush.msra.mxu0 0.0
  %486 = vmatpush.msra.mxu0 0.0
  %487 = vmatpush.msra.mxu0 0.0
  %488 = vmatpush.msra.mxu0 %v463
  %489 = vmatpush.msra.mxu0 %v462
  %490 = vmatpush.msra.mxu0 %v461
  %491 = vmatpush.msra.mxu0 %v460
  %492 = vmatmul.f32.gmra.mxu0 %v465
  %v493 = vpop.f32.mrf.mxu0
  %v494 = vadd.f32 0.0, %v493
  %495 = vmatmul.f32.gmra.mxu0 %v468
  %v496 = vpop.f32.mrf.mxu0
  %v497 = vadd.f32 0.0, %v496
  %498 = vmatmul.f32.gmra.mxu0 %v471
  %v499 = vpop.f32.mrf.mxu0
  %v500 = vadd.f32 0.0, %v499
  %501 = vmatmul.f32.gmra.mxu0 %v474
  %v502 = vpop.f32.mrf.mxu0
  %v503 = vadd.f32 0.0, %v502
  %504 = vdwg.mxu0
  %v505 = vadd.f32 %v431, %v494
  %v506 = vadd.f32 %v432, %v497
  %v507 = vadd.f32 %v433, %v500
  %v508 = vadd.f32 %v434, %v503
  %v509 = vrot.slane %v115, 1
  %v510 = vrot.slane %v116, 1
  %v511 = vrot.slane %v117, 1
  %v512 = vrot.slane %v118, 1
  %vm513 = vcmp.lt.s32.totalorder %v120, 7
  %v514 = vsel %vm513, %v511, %v512
  %v515 = vsel %vm513, %v510, %v511
  %v516 = vsel %vm513, %v509, %v510
  %v517 = vsel %vm513, %v512, %v509
  %v518 = vadd.s32 %v168, 1
  %v519 = vadd.s32 %v169, 1
  %v520 = vadd.s32 %v170, 1
  %v521 = vadd.s32 %v171, 1
  %vm522 = vcmp.ge.s32.totalorder %v518, 0
  %vm523 = vcmp.ge.s32.totalorder %v519, 0
  %vm524 = vcmp.ge.s32.totalorder %v520, 0
  %vm525 = vcmp.ge.s32.totalorder %v521, 0
  %vm526 = vcmp.lt.s32.totalorder %v518, 16
  %vm527 = vcmp.lt.s32.totalorder %v519, 16
  %vm528 = vcmp.lt.s32.totalorder %v520, 16
  %vm529 = vcmp.lt.s32.totalorder %v521, 16
  %vm530 = vmand %vm522, %vm526
  %vm531 = vmand %vm523, %vm527
  %vm532 = vmand %vm524, %vm528
  %vm533 = vmand %vm525, %vm529
  %v534 = vsel %vm530, 1, 0
  %v535 = vsel %vm531, 1, 0
  %v536 = vsel %vm532, 1, 0
  %v537 = vsel %vm533, 1, 0
  %vm538 = vcmp.eq.s32.totalorder %v534, 1
  %vm539 = vcmp.eq.s32.totalorder %v535, 1
  %vm540 = vcmp.eq.s32.totalorder %v536, 1
  %vm541 = vcmp.eq.s32.totalorder %v537, 1
  %v542 = vsel %vm538, %v516, 0.0
  %v543 = vsel %vm539, %v515, 0.0
  %v544 = vsel %vm540, %v514, 0.0
  %v545 = vsel %vm541, %v517, 0.0
  %s546 = scalar_lea.vmem %s0, 128
  %v547 = vld [vmem:[%s546] sm:$0xff]
  %v548 = vld [vmem:[%s546 + $0x8] sm:$0xff]
  %v549 = vld [vmem:[%s546 + $0x10] sm:$0xff]
  %v550 = vld [vmem:[%s546 + $0x18] sm:$0xff]
  %v552 = vsel %vm215, %v542, 0
  %v555 = vsel %vm215, %v543, 0
  %v558 = vsel %vm215, %v544, 0
  %v561 = vsel %vm215, %v545, 0
  %563 = vmatpush.msra.mxu0 0.0
  %564 = vmatpush.msra.mxu0 0.0
  %565 = vmatpush.msra.mxu0 0.0
  %566 = vmatpush.msra.mxu0 0.0
  %567 = vmatpush.msra.mxu0 0.0
  %568 = vmatpush.msra.mxu0 0.0
  %569 = vmatpush.msra.mxu0 0.0
  %570 = vmatpush.msra.mxu0 0.0
  %571 = vmatpush.msra.mxu0 0.0
  %572 = vmatpush.msra.mxu0 0.0
  %573 = vmatpush.msra.mxu0 0.0
  %574 = vmatpush.msra.mxu0 0.0
  %575 = vmatpush.msra.mxu0 %v550
  %576 = vmatpush.msra.mxu0 %v549
  %577 = vmatpush.msra.mxu0 %v548
  %578 = vmatpush.msra.mxu0 %v547
  %579 = vmatmul.f32.gmra.mxu0 %v552
  %v580 = vpop.f32.mrf.mxu0
  %v581 = vadd.f32 0.0, %v580
  %582 = vmatmul.f32.gmra.mxu0 %v555
  %v583 = vpop.f32.mrf.mxu0
  %v584 = vadd.f32 0.0, %v583
  %585 = vmatmul.f32.gmra.mxu0 %v558
  %v586 = vpop.f32.mrf.mxu0
  %v587 = vadd.f32 0.0, %v586
  %588 = vmatmul.f32.gmra.mxu0 %v561
  %v589 = vpop.f32.mrf.mxu0
  %v590 = vadd.f32 0.0, %v589
  %591 = vdwg.mxu0
  %v592 = vadd.f32 %v505, %v581
  %v593 = vadd.f32 %v506, %v584
  %v594 = vadd.f32 %v507, %v587
  %v595 = vadd.f32 %v508, %v590
  %v596 = vrot.slane %v115, 2
  %v597 = vrot.slane %v116, 2
  %v598 = vrot.slane %v117, 2
  %v599 = vrot.slane %v118, 2
  %vm600 = vcmp.lt.s32.totalorder %v120, 6
  %v601 = vsel %vm600, %v598, %v599
  %v602 = vsel %vm600, %v597, %v598
  %v603 = vsel %vm600, %v596, %v597
  %v604 = vsel %vm600, %v599, %v596
  %v605 = vadd.s32 %v168, 2
  %v606 = vadd.s32 %v169, 2
  %v607 = vadd.s32 %v170, 2
  %v608 = vadd.s32 %v171, 2
  %vm609 = vcmp.ge.s32.totalorder %v605, 0
  %vm610 = vcmp.ge.s32.totalorder %v606, 0
  %vm611 = vcmp.ge.s32.totalorder %v607, 0
  %vm612 = vcmp.ge.s32.totalorder %v608, 0
  %vm613 = vcmp.lt.s32.totalorder %v605, 16
  %vm614 = vcmp.lt.s32.totalorder %v606, 16
  %vm615 = vcmp.lt.s32.totalorder %v607, 16
  %vm616 = vcmp.lt.s32.totalorder %v608, 16
  %vm617 = vmand %vm609, %vm613
  %vm618 = vmand %vm610, %vm614
  %vm619 = vmand %vm611, %vm615
  %vm620 = vmand %vm612, %vm616
  %v621 = vsel %vm617, 1, 0
  %v622 = vsel %vm618, 1, 0
  %v623 = vsel %vm619, 1, 0
  %v624 = vsel %vm620, 1, 0
  %vm625 = vcmp.eq.s32.totalorder %v621, 1
  %vm626 = vcmp.eq.s32.totalorder %v622, 1
  %vm627 = vcmp.eq.s32.totalorder %v623, 1
  %vm628 = vcmp.eq.s32.totalorder %v624, 1
  %v629 = vsel %vm625, %v603, 0.0
  %v630 = vsel %vm626, %v602, 0.0
  %v631 = vsel %vm627, %v601, 0.0
  %v632 = vsel %vm628, %v604, 0.0
  %s633 = scalar_lea.vmem %s0, 160
  %v634 = vld [vmem:[%s633] sm:$0xff]
  %v635 = vld [vmem:[%s633 + $0x8] sm:$0xff]
  %v636 = vld [vmem:[%s633 + $0x10] sm:$0xff]
  %v637 = vld [vmem:[%s633 + $0x18] sm:$0xff]
  %v639 = vsel %vm215, %v629, 0
  %v642 = vsel %vm215, %v630, 0
  %v645 = vsel %vm215, %v631, 0
  %v648 = vsel %vm215, %v632, 0
  %650 = vmatpush.msra.mxu0 0.0
  %651 = vmatpush.msra.mxu0 0.0
  %652 = vmatpush.msra.mxu0 0.0
  %653 = vmatpush.msra.mxu0 0.0
  %654 = vmatpush.msra.mxu0 0.0
  %655 = vmatpush.msra.mxu0 0.0
  %656 = vmatpush.msra.mxu0 0.0
  %657 = vmatpush.msra.mxu0 0.0
  %658 = vmatpush.msra.mxu0 0.0
  %659 = vmatpush.msra.mxu0 0.0
  %660 = vmatpush.msra.mxu0 0.0
  %661 = vmatpush.msra.mxu0 0.0
  %662 = vmatpush.msra.mxu0 %v637
  %663 = vmatpush.msra.mxu0 %v636
  %664 = vmatpush.msra.mxu0 %v635
  %665 = vmatpush.msra.mxu0 %v634
  %666 = vmatmul.f32.gmra.mxu0 %v639
  %v667 = vpop.f32.mrf.mxu0
  %v668 = vadd.f32 0.0, %v667
  %669 = vmatmul.f32.gmra.mxu0 %v642
  %v670 = vpop.f32.mrf.mxu0
  %v671 = vadd.f32 0.0, %v670
  %672 = vmatmul.f32.gmra.mxu0 %v645
  %v673 = vpop.f32.mrf.mxu0
  %v674 = vadd.f32 0.0, %v673
  %675 = vmatmul.f32.gmra.mxu0 %v648
  %v676 = vpop.f32.mrf.mxu0
  %v677 = vadd.f32 0.0, %v676
  %678 = vdwg.mxu0
  %v679 = vadd.f32 %v592, %v668
  %v680 = vadd.f32 %v593, %v671
  %v681 = vadd.f32 %v594, %v674
  %v682 = vadd.f32 %v595, %v677
  %v683 = vrot.slane %v115, 3
  %v684 = vrot.slane %v116, 3
  %v685 = vrot.slane %v117, 3
  %v686 = vrot.slane %v118, 3
  %vm687 = vcmp.lt.s32.totalorder %v120, 5
  %v688 = vsel %vm687, %v685, %v686
  %v689 = vsel %vm687, %v684, %v685
  %v690 = vsel %vm687, %v683, %v684
  %v691 = vsel %vm687, %v686, %v683
  %v692 = vadd.s32 %v168, 3
  %v693 = vadd.s32 %v169, 3
  %v694 = vadd.s32 %v170, 3
  %v695 = vadd.s32 %v171, 3
  %vm696 = vcmp.ge.s32.totalorder %v692, 0
  %vm697 = vcmp.ge.s32.totalorder %v693, 0
  %vm698 = vcmp.ge.s32.totalorder %v694, 0
  %vm699 = vcmp.ge.s32.totalorder %v695, 0
  %vm700 = vcmp.lt.s32.totalorder %v692, 16
  %vm701 = vcmp.lt.s32.totalorder %v693, 16
  %vm702 = vcmp.lt.s32.totalorder %v694, 16
  %vm703 = vcmp.lt.s32.totalorder %v695, 16
  %vm704 = vmand %vm696, %vm700
  %vm705 = vmand %vm697, %vm701
  %vm706 = vmand %vm698, %vm702
  %vm707 = vmand %vm699, %vm703
  %v708 = vsel %vm704, 1, 0
  %v709 = vsel %vm705, 1, 0
  %v710 = vsel %vm706, 1, 0
  %v711 = vsel %vm707, 1, 0
  %vm712 = vcmp.eq.s32.totalorder %v708, 1
  %vm713 = vcmp.eq.s32.totalorder %v709, 1
  %vm714 = vcmp.eq.s32.totalorder %v710, 1
  %vm715 = vcmp.eq.s32.totalorder %v711, 1
  %v716 = vsel %vm712, %v690, 0.0
  %v717 = vsel %vm713, %v689, 0.0
  %v718 = vsel %vm714, %v688, 0.0
  %v719 = vsel %vm715, %v691, 0.0
  %s720 = scalar_lea.vmem %s0, 192
  %v721 = vld [vmem:[%s720] sm:$0xff]
  %v722 = vld [vmem:[%s720 + $0x8] sm:$0xff]
  %v723 = vld [vmem:[%s720 + $0x10] sm:$0xff]
  %v724 = vld [vmem:[%s720 + $0x18] sm:$0xff]
  %v726 = vsel %vm215, %v716, 0
  %v729 = vsel %vm215, %v717, 0
  %v732 = vsel %vm215, %v718, 0
  %v735 = vsel %vm215, %v719, 0
  %737 = vmatpush.msra.mxu0 0.0
  %738 = vmatpush.msra.mxu0 0.0
  %739 = vmatpush.msra.mxu0 0.0
  %740 = vmatpush.msra.mxu0 0.0
  %741 = vmatpush.msra.mxu0 0.0
  %742 = vmatpush.msra.mxu0 0.0
  %743 = vmatpush.msra.mxu0 0.0
  %744 = vmatpush.msra.mxu0 0.0
  %745 = vmatpush.msra.mxu0 0.0
  %746 = vmatpush.msra.mxu0 0.0
  %747 = vmatpush.msra.mxu0 0.0
  %748 = vmatpush.msra.mxu0 0.0
  %749 = vmatpush.msra.mxu0 %v724
  %750 = vmatpush.msra.mxu0 %v723
  %751 = vmatpush.msra.mxu0 %v722
  %752 = vmatpush.msra.mxu0 %v721
  %753 = vmatmul.f32.gmra.mxu0 %v726
  %v754 = vpop.f32.mrf.mxu0
  %v755 = vadd.f32 0.0, %v754
  %756 = vmatmul.f32.gmra.mxu0 %v729
  %v757 = vpop.f32.mrf.mxu0
  %v758 = vadd.f32 0.0, %v757
  %759 = vmatmul.f32.gmra.mxu0 %v732
  %v760 = vpop.f32.mrf.mxu0
  %v761 = vadd.f32 0.0, %v760
  %762 = vmatmul.f32.gmra.mxu0 %v735
  %v763 = vpop.f32.mrf.mxu0
  %v764 = vadd.f32 0.0, %v763
  %765 = vdwg.mxu0
  %v766 = vadd.f32 %v679, %v755
  %v767 = vadd.f32 %v680, %v758
  %v768 = vadd.f32 %v681, %v761
  %v769 = vadd.f32 %v682, %v764
  %v770 = vxor.u32 %v766, 2147483648
  %v771 = vxor.u32 %v767, 2147483648
  %v772 = vxor.u32 %v768, 2147483648
  %v773 = vxor.u32 %v769, 2147483648
  %v774 = vmul.f32 %v770, 1.442695
  %v775 = vpow.pop %v774
  %v776 = vmul.f32 %v771, 1.442695
  %v777 = vpow.pop %v776
  %v778 = vmul.f32 %v772, 1.442695
  %v779 = vpow.pop %v778
  %v780 = vmul.f32 %v773, 1.442695
  %v781 = vpow.pop %v780
  %v782 = vadd.f32 %v775, 1.0
  %v783 = vadd.f32 %v777, 1.0
  %v784 = vadd.f32 %v779, 1.0
  %v785 = vadd.f32 %v781, 1.0
  %v786 = vrcp.pop %v782
  %v787 = vmul.f32 %v782, %v786
  %v788 = vsub.f32 1.0, %v787
  %v789 = vmul.f32 %v786, %v788
  %v790 = vadd.f32 %v786, %v789
  %vm791 = vweird.f32 %v782
  %vm792 = vweird.f32 %v786
  %vm793 = vmor %vm791, %vm792
  %v794 = vsel %vm793, %v786, %v790
  %v795 = vand.u32 2147483647, %v782
  %vm796 = vcmp.eq.f32.partialorder %v795, 8.507059e+37
  %v797 = vand.u32 %v782, 2147483648
  %v798 = vor.u32 1.1754944e-38, %v797
  %v799 = vsel %vm796, %v798, %v794
  %v800 = vmul.f32 1.0, %v799
  %v801 = vrcp.pop %v783
  %v802 = vmul.f32 %v783, %v801
  %v803 = vsub.f32 1.0, %v802
  %v804 = vmul.f32 %v801, %v803
  %v805 = vadd.f32 %v801, %v804
  %vm806 = vweird.f32 %v783
  %vm807 = vweird.f32 %v801
  %vm808 = vmor %vm806, %vm807
  %v809 = vsel %vm808, %v801, %v805
  %v810 = vand.u32 2147483647, %v783
  %vm811 = vcmp.eq.f32.partialorder %v810, 8.507059e+37
  %v812 = vand.u32 %v783, 2147483648
  %v813 = vor.u32 1.1754944e-38, %v812
  %v814 = vsel %vm811, %v813, %v809
  %v815 = vmul.f32 1.0, %v814
  %v816 = vrcp.pop %v784
  %v817 = vmul.f32 %v784, %v816
  %v818 = vsub.f32 1.0, %v817
  %v819 = vmul.f32 %v816, %v818
  %v820 = vadd.f32 %v816, %v819
  %vm821 = vweird.f32 %v784
  %vm822 = vweird.f32 %v816
  %vm823 = vmor %vm821, %vm822
  %v824 = vsel %vm823, %v816, %v820
  %v825 = vand.u32 2147483647, %v784
  %vm826 = vcmp.eq.f32.partialorder %v825, 8.507059e+37
  %v827 = vand.u32 %v784, 2147483648
  %v828 = vor.u32 1.1754944e-38, %v827
  %v829 = vsel %vm826, %v828, %v824
  %v830 = vmul.f32 1.0, %v829
  %v831 = vrcp.pop %v785
  %v832 = vmul.f32 %v785, %v831
  %v833 = vsub.f32 1.0, %v832
  %v834 = vmul.f32 %v831, %v833
  %v835 = vadd.f32 %v831, %v834
  %vm836 = vweird.f32 %v785
  %vm837 = vweird.f32 %v831
  %vm838 = vmor %vm836, %vm837
  %v839 = vsel %vm838, %v831, %v835
  %v840 = vand.u32 2147483647, %v785
  %vm841 = vcmp.eq.f32.partialorder %v840, 8.507059e+37
  %v842 = vand.u32 %v785, 2147483648
  %v843 = vor.u32 1.1754944e-38, %v842
  %v844 = vsel %vm841, %v843, %v839
  %v845 = vmul.f32 1.0, %v844
  %846 = vst.msk [vmem:[%s3] sm:$0xff] %vm31, %v800
  %847 = vst.msk [vmem:[%s3 + $0x8] sm:$0xff] %vm31, %v815
  %848 = vst.msk [vmem:[%s3 + $0x10] sm:$0xff] %vm31, %v830
  %849 = vst.msk [vmem:[%s3 + $0x18] sm:$0xff] %vm31, %v845
  // Predicated region
  $region14: #{tpu_custom_call.1} parent=0 // pred_check
    _
  $region15: #{tpu_custom_call.1} parent=0 // pred_check_branch
    %851 = sbr.rel (0) target = $region17
  $region16: #{tpu_custom_call.1} parent=0 // pred_region
    _
  $region17: #{tpu_custom_call.1} parent=0 // pred_fallthru
    _
  // Predicated region
  $region18: #{tpu_custom_call.1} parent=0 // pred_check
    _
  $region19: #{tpu_custom_call.1} parent=0 // pred_check_branch
    %853 = sbr.rel (0) target = $region21
  $region20: #{tpu_custom_call.1} parent=0 // pred_region
    _
  $region21: #{tpu_custom_call.1} parent=0 // pred_fallthru
    _

</llo_original>
